<compile_context>
chip_gen: v5e
topology: v5e:2x2
jax: 0.10.0
libtpu: 0.0.40
codegen_flags: <defaults>
</compile_context>

<pallas_src>
import functools

import jax
import jax.numpy as jnp
import numpy as np
from jax.experimental import pallas as pl
from jax.experimental.pallas import tpu as pltpu


# --------------------------------- the kernel --------------------------------

def _adaln_kernel(eps, x_ref, scale_ref, shift_ref, o_ref):
    # x_ref / o_ref: (br, D);  scale_ref / shift_ref: (1, D)   (batch dim squeezed)
    x = x_ref[...].astype(jnp.float32)           # (br, D) f32 elementwise math
    sc = scale_ref[...].astype(jnp.float32)      # (1, D)
    sh = shift_ref[...].astype(jnp.float32)      # (1, D)

    d = x.shape[-1]
    inv_d = 1.0 / d
    ones_col = jnp.ones((d, 1), jnp.float32)     # tiny; feeds the MXU reductions

    # Pass 1: row sums on the MXU (vector-extended slot), not the XLU.
    mu = jnp.dot(x, ones_col, preferred_element_type=jnp.float32) * inv_d        # (br, 1)
    xc = x - mu                                   # needed for x_hat anyway
    # Pass 2: centered sum-of-squares on the MXU -> biased variance, PyTorch-equivalent
    # numerics (no E[x^2]-mu^2 cancellation), non-negative by construction.
    var = jnp.dot(xc * xc, ones_col, preferred_element_type=jnp.float32) * inv_d  # (br, 1)

    x_hat = xc * jax.lax.rsqrt(var + eps)

    gain = 1.0 + sc                               # hoisted; broadcast over rows once
    o_ref[...] = (x_hat * gain + sh).astype(o_ref.dtype)


# --------------------------------- wrapper ------------------------------------

def _pick_block_rows(seq_len, d_model, itemsize,
                     *, target_block_bytes=int(1.5 * (1 << 20)), max_rows=4096):
    """Row tile sized by a VMEM byte budget (f32-equivalent, since the kernel
    upcasts to f32 internally), rounded to a multiple of 8 sublanes."""
    bytes_per_row = d_model * max(itemsize, 4)
    rows = target_block_bytes // max(bytes_per_row, 1)
    rows = max(8, min(int(rows), max_rows))
    rows = max(8, (rows // 8) * 8)
    # No point tiling larger than the (8-rounded) sequence itself.
    rows = min(rows, ((seq_len + 7) // 8) * 8)
    return rows


def adaptive_layer_norm(x, scale, shift, *, eps=1e-5, block_rows=None, buffers=None):
    """x: (B, S, D); scale, shift: (B, D) -> (B, S, D).

    buffers: optional pipeline depth for the x/out BlockSpecs (e.g. 3 on v7x if the
    trace shows exposed DMA); None keeps the default double-buffering.
    """
    B, S, D = x.shape
    itemsize = jnp.dtype(x.dtype).itemsize
    br = block_rows if block_rows is not None else _pick_block_rows(S, D, itemsize)
    grid = (B, pl.cdiv(S, br))

    scale3 = scale.reshape(B, 1, D)
    shift3 = shift.reshape(B, 1, D)

    # Explicit VMEM budget: double-buffered x + out windows, in-kernel f32 temps, slack.
    blk_io = br * D * itemsize
    blk_f32 = br * D * 4
    vmem_est = 2 * blk_io + 2 * blk_io + 6 * blk_f32 + 8 * D * 4 + (1 << 20)
    vmem_limit = int(min(max(vmem_est, 24 << 20), 48 << 20))   # stays within v7x headroom

    pm = {} if buffers is None else dict(pipeline_mode=pl.Buffered(buffers))
    x_spec = pl.BlockSpec((pl.Squeezed(), br, D), lambda b, s: (b, s, 0), **pm)
    o_spec = pl.BlockSpec((pl.Squeezed(), br, D), lambda b, s: (b, s, 0), **pm)
    vec_spec = pl.BlockSpec((pl.Squeezed(), 1, D), lambda b, s: (b, 0, 0))

    return pl.pallas_call(
        functools.partial(_adaln_kernel, eps),
        out_shape=jax.ShapeDtypeStruct((B, S, D), x.dtype),
        grid_spec=pltpu.PrefetchScalarGridSpec(
            num_scalar_prefetch=0,
            grid=grid,
            in_specs=[
                x_spec,      # x tile          (br, D)
                vec_spec,    # scale per batch (1, D)
                vec_spec,    # shift per batch (1, D)
            ],
            out_specs=o_spec,
        ),
        compiler_params=pltpu.CompilerParams(
            dimension_semantics=("parallel", "parallel"),   # independent tiles -> v7x dual-TC
            vmem_limit_bytes=vmem_limit,
        ),
    )(x, scale3, shift3)


# ------------------------------ pure-JAX reference ------------------------------

def reference(x, scale, shift, eps=1e-5):
    mu = jnp.mean(x, axis=-1, keepdims=True)
    var = jnp.mean((x - mu) ** 2, axis=-1, keepdims=True)
    x_hat = (x - mu) / jnp.sqrt(var + eps)
    return x_hat * (1.0 + scale[:, None, :]) + shift[:, None, :]


# ----------------------------------- main ---------------------------------------

if __name__ == "__main__":
    # Small but lane-dense demo shapes (d_model multiple of 128 -> unmasked vst/vld).
    # Benchmark at production (B, S, D) with an xprof trace to see the tiling wins.
    B, S, D = 2, 64, 128

    root = jax.random.PRNGKey(0)
    kx, ks, kh = jax.random.split(root, 3)
    x = jax.random.normal(kx, (B, S, D), jnp.float32)
    scale = jax.random.normal(ks, (B, D), jnp.float32) * 0.1
    shift = jax.random.normal(kh, (B, D), jnp.float32) * 0.1

    out = jax.block_until_ready(adaptive_layer_norm(x, scale, shift))
    ref = jax.block_until_ready(reference(x, scale, shift))
    np.testing.assert_allclose(np.asarray(out), np.asarray(ref), rtol=1e-4, atol=1e-4)

    print("KERNEL_OK")
</pallas_src>

<mosaic_0001>
module attributes {stable_mosaic.version = 11 : i64} {
  func.func @_adaln_kernel(%arg0: i32, %arg1: i32, %arg2: memref<1x64x128xf32, #tpu.memory_space<vmem>>, %arg3: memref<1x1x128xf32, #tpu.memory_space<vmem>>, %arg4: memref<1x1x128xf32, #tpu.memory_space<vmem>>, %arg5: memref<1x64x128xf32, #tpu.memory_space<vmem>>) attributes {dimension_semantics = [#tpu.dimension_semantics<parallel>, #tpu.dimension_semantics<parallel>], iteration_bounds = array<i64: 2, 1>, scalar_prefetch = 0 : i64, scratch_operands = 0 : i64, tpu.core_type = #tpu.core_type<tc>, window_params = [{transform_indices = @transform_0, window_bounds = array<i64: 1, 64, 128>}, {transform_indices = @transform_1, window_bounds = array<i64: 1, 1, 128>}, {transform_indices = @transform_2, window_bounds = array<i64: 1, 1, 128>}, {transform_indices = @transform_3, window_bounds = array<i64: 1, 64, 128>}]} {
    %c0 = arith.constant 0 : index
    %c0_0 = arith.constant 0 : index
    %c0_1 = arith.constant 0 : index
    %0 = vector.load %arg2[%c0, %c0_0, %c0_1] : memref<1x64x128xf32, #tpu.memory_space<vmem>>, vector<1x64x128xf32>
    %1 = vector.shape_cast %0 : vector<1x64x128xf32> to vector<64x128xf32>
    %c0_2 = arith.constant 0 : index
    %c0_3 = arith.constant 0 : index
    %c0_4 = arith.constant 0 : index
    %2 = vector.load %arg3[%c0_2, %c0_3, %c0_4] : memref<1x1x128xf32, #tpu.memory_space<vmem>>, vector<1x1x128xf32>
    %3 = vector.shape_cast %2 : vector<1x1x128xf32> to vector<1x128xf32>
    %c0_5 = arith.constant 0 : index
    %c0_6 = arith.constant 0 : index
    %c0_7 = arith.constant 0 : index
    %4 = vector.load %arg4[%c0_5, %c0_6, %c0_7] : memref<1x1x128xf32, #tpu.memory_space<vmem>>, vector<1x1x128xf32>
    %5 = vector.shape_cast %4 : vector<1x1x128xf32> to vector<1x128xf32>
    %cst = arith.constant 1.000000e+00 : f32
    %6 = vector.broadcast %cst : f32 to vector<128x1xf32>
    %cst_8 = arith.constant dense<0.000000e+00> : vector<64x1xf32>
    %7 = tpu.matmul %1, %6, %cst_8 {dimension_numbers = #tpu.dot_dimension_numbers<[1], [0], [0], [1], [0, 0, 1, 1], [], []>} : vector<64x128xf32>, vector<128x1xf32>, vector<64x1xf32> -> vector<64x1xf32>
    %cst_9 = arith.constant 7.812500e-03 : f32
    %8 = vector.broadcast %cst_9 : f32 to vector<64x1xf32>
    %9 = arith.mulf %7, %8 : vector<64x1xf32>
    %10 = vector.broadcast %9 : vector<64x1xf32> to vector<64x128xf32>
    %11 = arith.subf %1, %10 : vector<64x128xf32>
    %12 = arith.mulf %11, %11 : vector<64x128xf32>
    %cst_10 = arith.constant dense<0.000000e+00> : vector<64x1xf32>
    %13 = tpu.matmul %12, %6, %cst_10 {dimension_numbers = #tpu.dot_dimension_numbers<[1], [0], [0], [1], [0, 0, 1, 1], [], []>} : vector<64x128xf32>, vector<128x1xf32>, vector<64x1xf32> -> vector<64x1xf32>
    %cst_11 = arith.constant 7.812500e-03 : f32
    %14 = vector.broadcast %cst_11 : f32 to vector<64x1xf32>
    %15 = arith.mulf %13, %14 : vector<64x1xf32>
    %cst_12 = arith.constant 9.99999974E-6 : f32
    %16 = vector.broadcast %cst_12 : f32 to vector<64x1xf32>
    %17 = arith.addf %15, %16 : vector<64x1xf32>
    %18 = math.rsqrt %17 : vector<64x1xf32>
    %19 = vector.broadcast %18 : vector<64x1xf32> to vector<64x128xf32>
    %20 = arith.mulf %11, %19 : vector<64x128xf32>
    %cst_13 = arith.constant 1.000000e+00 : f32
    %21 = vector.broadcast %cst_13 : f32 to vector<1x128xf32>
    %22 = arith.addf %21, %3 : vector<1x128xf32>
    %23 = vector.broadcast %22 : vector<1x128xf32> to vector<64x128xf32>
    %24 = arith.mulf %20, %23 : vector<64x128xf32>
    %25 = vector.broadcast %5 : vector<1x128xf32> to vector<64x128xf32>
    %26 = arith.addf %24, %25 : vector<64x128xf32>
    %c0_14 = arith.constant 0 : index
    %c0_15 = arith.constant 0 : index
    %c0_16 = arith.constant 0 : index
    %27 = vector.load %arg5[%c0_14, %c0_15, %c0_16] : memref<1x64x128xf32, #tpu.memory_space<vmem>>, vector<1x64x128xf32>
    %28 = vector.shape_cast %27 : vector<1x64x128xf32> to vector<64x128xf32>
    %29 = vector.shape_cast %26 : vector<64x128xf32> to vector<1x64x128xf32>
    tpu.vector_store %arg5[%c0_14, %c0_15, %c0_16], %29 {strides = array<i32>} : memref<1x64x128xf32, #tpu.memory_space<vmem>>, vector<1x64x128xf32>,
    return
  }
  func.func @transform_0(%arg0: i32, %arg1: i32) -> (i32, i32, i32) {
    %c0_i32 = arith.constant 0 : i32
    %c0_i32_0 = arith.constant 0 : i32
    return %arg0, %arg1, %c0_i32 : i32, i32, i32
  }
  func.func @transform_1(%arg0: i32, %arg1: i32) -> (i32, i32, i32) {
    %c0_i32 = arith.constant 0 : i32
    %c0_i32_0 = arith.constant 0 : i32
    %c0_i32_1 = arith.constant 0 : i32
    return %arg0, %c0_i32, %c0_i32_0 : i32, i32, i32
  }
  func.func @transform_2(%arg0: i32, %arg1: i32) -> (i32, i32, i32) {
    %c0_i32 = arith.constant 0 : i32
    %c0_i32_0 = arith.constant 0 : i32
    %c0_i32_1 = arith.constant 0 : i32
    return %arg0, %c0_i32, %c0_i32_0 : i32, i32, i32
  }
  func.func @transform_3(%arg0: i32, %arg1: i32) -> (i32, i32, i32) {
    %c0_i32 = arith.constant 0 : i32
    %c0_i32_0 = arith.constant 0 : i32
    return %arg0, %arg1, %c0_i32 : i32, i32, i32
  }
}

</mosaic_0001>

<llo_original>
// kernel: tpu_custom_call.1
$region0: #{tpu_custom_call.1}
  #allocation0 [shape = 'u32[]', space=smem, size = 0x4, offset = 0x4, fixed_abs, tag = 'smem constant byte address 0x4 - core index']
  #allocation1 [shape = 'u32[72,128]{1,0:T(1,128)}', space=vmem, size = 0x9000, scoped, tag = 'internal scratch']
  %s0 = inlined_call_operand.hbm [shape: f32[2,64,128], index: 0, kind: input, shape index: {}]
  %s1 = inlined_call_operand.hbm [shape: f32[2,1,128], index: 1, kind: input, shape index: {}]
  %s2 = inlined_call_operand.hbm [shape: f32[2,1,128], index: 2, kind: input, shape index: {}]
  %s3 = inlined_call_operand.hbm [shape: f32[2,64,128], index: 3, kind: output, shape index: {}]
  %s4 = sld [smem:[#allocation0]]
  $region57: #{tpu_custom_call.1} parent=0
    _
  %s6 = ssub.s32 1, %s4
  %s7 = scalar_select 0, %s6, %s4
  $region1: #{tpu_custom_call.1} parent=0
    #allocation2 [shape = 'u8[65536]{0}', space=vmem, size = 0x10000, scoped, tag = 'input window, operand 0']
    #allocation3 [shape = 's32[2]{0}', space=sflag, size = 0x8, scoped, tag = 'scoped memory for tpu_custom_call.1']
    #allocation4 [shape = 's32[2]{0}', space=sflag, size = 0x8, scoped, tag = 'scoped memory for tpu_custom_call.1']
    #allocation5 [shape = 'u8[1024]{0}', space=vmem, size = 0x400, scoped, tag = 'input window, operand 1']
    #allocation6 [shape = 's32[2]{0}', space=sflag, size = 0x8, scoped, tag = 'scoped memory for tpu_custom_call.1']
    #allocation7 [shape = 'u8[1024]{0}', space=vmem, size = 0x400, scoped, tag = 'input window, operand 2']
    #allocation8 [shape = 'u8[65536]{0}', space=vmem, size = 0x10000, scoped, tag = 'output window, operand 0']
    %8 = vsyncpa [#allocation3], 0
    %s9 = scalar_lea.sflag [#allocation3], 1
    %10 = vsyncpa %s9, 0
    %11 = vsyncpa [#allocation6], 0
    %s12 = scalar_lea.sflag [#allocation6], 1
    %13 = vsyncpa %s12, 0
    %14 = vsyncpa [#allocation4], 0
    %s15 = scalar_lea.sflag [#allocation4], 1
    %16 = vsyncpa %s15, 0
    loop: start=0, step=1, limit=4
    $region2: #{tpu_custom_call.1} parent=1 // loop_pre_header
      _
    $region3: #{tpu_custom_call.1} parent=1 // loop_header
      %s18 = sphi 0, %s22
      %p19 = scmp.ge.s32.totalorder %s18, 4
      %s25 = sphi 0, %s37
      %s26 = sphi 0, %s33
      %s27 = sphi 0, %s25
      %s28 = sphi 0, %s26
      %s29 = sphi 0, %s27
      %s30 = sphi 0, %s28
      %s42 = sphi 0, %s44
      %s45 = sphi 0, %s42
      %s46 = sphi 0, %s45
      %s62 = sphi 0, %s46
      %s68 = sphi 0, %s70
      %s71 = sphi 0, %s68
      %s72 = sphi 0, %s71
      %s88 = sphi 0, %s72
      %s94 = sphi 0, %s96
      %s97 = sphi 0, %s94
      %s98 = sphi 0, %s97
      %s114 = sphi 0, %s98
      %s122 = sphi 0, %s124
      %s125 = sphi 0, %s122
      %s126 = sphi 0, %s125
      %s142 = sphi 0, %s126
    $region4: #{tpu_custom_call.1} parent=1 // loop_header_branch
      %21 = sbr.rel (%p19) target = $region8
    $region5: #{tpu_custom_call.1} parent=1 // loop_body
      %s23 = ssub.s32 %s18, 1
      %s24 = ssub.s32 %s18, 2
      %s31 = sadd.s32 1, %s26
      %p32 = scmp.ge.s32.totalorder %s31, 1
      %s33 = scalar_select %p32, 0, %s31
      %s34 = sadd.s32 1, %s25
      %s35 = scalar_select %p32, %s34, %s25
      %p36 = scmp.ge.s32.totalorder %s35, 2
      %s37 = scalar_select %p36, 0, %s35
      %s38 = ssub.s32 %s25, %s37
      %s39 = ssub.s32 %s26, %s33
      %s40 = sor.u32 %s38, %s39
      %p41 = scmp.eq.s32.totalorder %s40, 0
      %s43 = sadd.s32 %s42, 1
      %s44 = scalar_select %p41, %s42, %s43
      %p47 = pneg %p41
      %p48 = scmp.eq.s32.totalorder %s18, 1
      %p49 = por %p47, %p48
      %p50 = scmp.ne.s32.totalorder %s42, %s45
      %p51 = scmp.eq.s32.totalorder %s18, 0
      %p52 = por %p50, %p51
      %p53 = scmp.ne.s32.totalorder %s42, %s45
      %p54 = scmp.eq.s32.totalorder %s23, 1
      %p55 = por %p53, %p54
      %p56 = scmp.ne.s32.totalorder %s45, %s46
      %p57 = scmp.eq.s32.totalorder %s23, 0
      %p58 = por %p56, %p57
      %p59 = scmp.ne.s32.totalorder %s45, %s46
      %p60 = scmp.eq.s32.totalorder %s24, 1
      %p61 = por %p59, %p60
      %p63 = scmp.ne.s32.totalorder %s46, %s62
      %p64 = scmp.eq.s32.totalorder %s24, 0
      %p65 = por %p63, %p64
      %s66 = ssub.s32 %s25, %s37
      %p67 = scmp.eq.s32.totalorder %s66, 0
      %s69 = sadd.s32 %s68, 1
      %s70 = scalar_select %p67, %s68, %s69
      %p73 = pneg %p67
      %p74 = scmp.eq.s32.totalorder %s18, 1
      %p75 = por %p73, %p74
      %p76 = scmp.ne.s32.totalorder %s68, %s71
      %p77 = scmp.eq.s32.totalorder %s18, 0
      %p78 = por %p76, %p77
      %p79 = scmp.ne.s32.totalorder %s68, %s71
      %p80 = scmp.eq.s32.totalorder %s23, 1
      %p81 = por %p79, %p80
      %p82 = scmp.ne.s32.totalorder %s71, %s72
      %p83 = scmp.eq.s32.totalorder %s23, 0
      %p84 = por %p82, %p83
      %p85 = scmp.ne.s32.totalorder %s71, %s72
      %p86 = scmp.eq.s32.totalorder %s24, 1
      %p87 = por %p85, %p86
      %p89 = scmp.ne.s32.totalorder %s72, %s88
      %p90 = scmp.eq.s32.totalorder %s24, 0
      %p91 = por %p89, %p90
      %s92 = ssub.s32 %s25, %s37
      %p93 = scmp.eq.s32.totalorder %s92, 0
      %s95 = sadd.s32 %s94, 1
      %s96 = scalar_select %p93, %s94, %s95
      %p99 = pneg %p93
      %p100 = scmp.eq.s32.totalorder %s18, 1
      %p101 = por %p99, %p100
      %p102 = scmp.ne.s32.totalorder %s94, %s97
      %p103 = scmp.eq.s32.totalorder %s18, 0
      %p104 = por %p102, %p103
      %p105 = scmp.ne.s32.totalorder %s94, %s97
      %p106 = scmp.eq.s32.totalorder %s23, 1
      %p107 = por %p105, %p106
      %p108 = scmp.ne.s32.totalorder %s97, %s98
      %p109 = scmp.eq.s32.totalorder %s23, 0
      %p110 = por %p108, %p109
      %p111 = scmp.ne.s32.totalorder %s97, %s98
      %p112 = scmp.eq.s32.totalorder %s24, 1
      %p113 = por %p111, %p112
      %p115 = scmp.ne.s32.totalorder %s98, %s114
      %p116 = scmp.eq.s32.totalorder %s24, 0
      %p117 = por %p115, %p116
      %s118 = ssub.s32 %s25, %s37
      %s119 = ssub.s32 %s26, %s33
      %s120 = sor.u32 %s118, %s119
      %p121 = scmp.eq.s32.totalorder %s120, 0
      %s123 = sadd.s32 %s122, 1
      %s124 = scalar_select %p121, %s122, %s123
      %p127 = pneg %p121
      %p128 = scmp.eq.s32.totalorder %s18, 1
      %p129 = por %p127, %p128
      %p130 = scmp.ne.s32.totalorder %s122, %s125
      %p131 = scmp.eq.s32.totalorder %s18, 0
      %p132 = por %p130, %p131
      %p133 = scmp.ne.s32.totalorder %s122, %s125
      %p134 = scmp.eq.s32.totalorder %s23, 1
      %p135 = por %p133, %p134
      %p136 = scmp.ne.s32.totalorder %s125, %s126
      %p137 = scmp.eq.s32.totalorder %s23, 0
      %p138 = por %p136, %p137
      %p139 = scmp.ne.s32.totalorder %s125, %s126
      %p140 = scmp.eq.s32.totalorder %s24, 1
      %p141 = por %p139, %p140
      %p143 = scmp.ne.s32.totalorder %s126, %s142
      %p144 = scmp.eq.s32.totalorder %s24, 0
      %p145 = por %p143, %p144
      %p146 = scmp.le.s32.totalorder 1, %s18
      %p147 = scmp.lt.s32.totalorder %s18, 3
      %p148 = pnand %p146, %p147
      %p149 = pneg %p148
      // Predicated region
      $region9: #{tpu_custom_call.1} parent=5 // pred_check
        _
      $region10: #{tpu_custom_call.1} parent=5 // pred_check_branch
        %151 = sbr.rel (%p148) target = $region12
      $region11: #{tpu_custom_call.1} parent=5 // pred_region
        %s152 = ssub.s32 %s18, 1
      $region12: #{tpu_custom_call.1} parent=5 // pred_fallthru
        _
      %p153 = scmp.lt.s32.totalorder %s18, 2
      // Predicated region
      $region13: #{tpu_custom_call.1} parent=5 // pred_check
        %p154 = pneg %p153
      $region14: #{tpu_custom_call.1} parent=5 // pred_check_branch
        %156 = sbr.rel (%p154) target = $region16
      $region15: #{tpu_custom_call.1} parent=5 // pred_region
        // Predicated region
        $region17: #{tpu_custom_call.1} parent=15 // pred_check
          %p157 = pneg %p52
        $region18: #{tpu_custom_call.1} parent=15 // pred_check_branch
          %159 = sbr.rel (%p157) target = $region20
        $region19: #{tpu_custom_call.1} parent=15 // pred_region
          %s160 = sand.u32 %s42, 1
          %s161 = scalar_lea.sflag [#allocation3], %s160
          %s162 = sand.u32 %s42, 1
          %s163 = smul.addr %s162, 64
          %s164 = scalar_lea.vmem [#allocation2], %s163
          %s165 = smul.u32 8, %s26
          %167 = vsyncadd %s161, 0
          %s168 = smul.addr %s25, 8
          %s169 = sadd.s32 %s165, %s168
          %s170 = smul.addr %s169, 8
          %s171 = scalar_lea.hbm %s0, %s170
          %s172 = sshll.u32 %s171, 4
          %s173 = int_to_ptr.hbm [resolvable:$true] %s172
          %s174 = sshll.u32 %s164, 4
          %s175 = int_to_ptr.vmem [resolvable:$true] %s174
          %180 = dma.hbm_to_vmem [thread:$0]  %s173, 1024, %s175, %s161, 128, 128, 8
        $region20: #{tpu_custom_call.1} parent=15 // pred_fallthru
          _
        // Predicated region
        $region21: #{tpu_custom_call.1} parent=15 // pred_check
          %p181 = pneg %p78
        $region22: #{tpu_custom_call.1} parent=15 // pred_check_branch
          %183 = sbr.rel (%p181) target = $region24
        $region23: #{tpu_custom_call.1} parent=15 // pred_region
          %s184 = sand.u32 %s18, 1
          %s185 = scalar_lea.sflag [#allocation6], %s184
          %s186 = sand.u32 %s68, 1
          %s187 = scalar_lea.vmem [#allocation5], %s186
          %189 = vsyncadd %s185, 0
          %s190 = scalar_lea.hbm %s1, %s25
          %s192 = sshll.u32 %s190, 4
          %s193 = int_to_ptr.hbm [resolvable:$true] %s192
          %s194 = sshll.u32 %s187, 4
          %s195 = int_to_ptr.vmem [resolvable:$true] %s194
          %197 = dma.hbm_to_vmem [thread:$0]  %s193, 16, %s195, %s185
        $region24: #{tpu_custom_call.1} parent=15 // pred_fallthru
          _
        // Predicated region
        $region25: #{tpu_custom_call.1} parent=15 // pred_check
          %p198 = pneg %p104
        $region26: #{tpu_custom_call.1} parent=15 // pred_check_branch
          %200 = sbr.rel (%p198) target = $region28
        $region27: #{tpu_custom_call.1} parent=15 // pred_region
          %s201 = sand.u32 %s18, 1
          %s202 = scalar_lea.sflag [#allocation6], %s201
          %s203 = sand.u32 %s94, 1
          %s204 = scalar_lea.vmem [#allocation7], %s203
          %206 = vsyncadd %s202, 0
          %s207 = scalar_lea.hbm %s2, %s25
          %s209 = sshll.u32 %s207, 4
          %s210 = int_to_ptr.hbm [resolvable:$true] %s209
          %s211 = sshll.u32 %s204, 4
          %s212 = int_to_ptr.vmem [resolvable:$true] %s211
          %214 = dma.hbm_to_vmem [thread:$0]  %s210, 16, %s212, %s202
        $region28: #{tpu_custom_call.1} parent=15 // pred_fallthru
          _
      $region16: #{tpu_custom_call.1} parent=5 // pred_fallthru
        _
      %p215 = scmp.le.s32.totalorder 1, %s18
      %p216 = scmp.lt.s32.totalorder %s18, 3
      %p217 = pnand %p215, %p216
      %p218 = pneg %p217
      // Predicated region
      $region29: #{tpu_custom_call.1} parent=5 // pred_check
        _
      $region30: #{tpu_custom_call.1} parent=5 // pred_check_branch
        %220 = sbr.rel (%p217) target = $region32
      $region31: #{tpu_custom_call.1} parent=5 // pred_region
        %s221 = ssub.s32 %s18, 1
        %s222 = sand.u32 %s45, 1
        %s223 = scalar_lea.sflag [#allocation3], %s222
        %s224 = sand.u32 %s45, 1
        %s225 = smul.addr %s224, 64
        %s226 = scalar_lea.vmem [#allocation2], %s225
        // Predicated region
        $region33: #{tpu_custom_call.1} parent=31 // pred_check
          %p227 = pneg %p58
        $region34: #{tpu_custom_call.1} parent=31 // pred_check_branch
          %229 = sbr.rel (%p227) target = $region36
        $region35: #{tpu_custom_call.1} parent=31 // pred_region
          %231 = dma.done %s223, 1024
        $region36: #{tpu_custom_call.1} parent=31 // pred_fallthru
          _
        %s232 = sand.u32 %s23, 1
        %s233 = scalar_lea.sflag [#allocation6], %s232
        %s234 = sand.u32 %s71, 1
        %s235 = scalar_lea.vmem [#allocation5], %s234
        // Predicated region
        $region37: #{tpu_custom_call.1} parent=31 // pred_check
          %p236 = pneg %p84
        $region38: #{tpu_custom_call.1} parent=31 // pred_check_branch
          %238 = sbr.rel (%p236) target = $region40
        $region39: #{tpu_custom_call.1} parent=31 // pred_region
          %240 = dma.done %s233, 16
        $region40: #{tpu_custom_call.1} parent=31 // pred_fallthru
          _
        %s241 = sand.u32 %s23, 1
        %s242 = scalar_lea.sflag [#allocation6], %s241
        %s243 = sand.u32 %s97, 1
        %s244 = scalar_lea.vmem [#allocation7], %s243
        // Predicated region
        $region41: #{tpu_custom_call.1} parent=31 // pred_check
          %p245 = pneg %p110
        $region42: #{tpu_custom_call.1} parent=31 // pred_check_branch
          %247 = sbr.rel (%p245) target = $region44
        $region43: #{tpu_custom_call.1} parent=31 // pred_region
          %249 = dma.done %s242, 16
        $region44: #{tpu_custom_call.1} parent=31 // pred_fallthru
          _
        %s250 = sand.u32 %s45, 1
        %s251 = scalar_lea.sflag [#allocation3], %s250
        %s252 = sand.u32 %s45, 1
        %s253 = smul.addr %s252, 64
        %s254 = scalar_lea.vmem [#allocation2], %s253
        %p255 = pneg %p58
        %p256 = pneg %p55
        %s257 = sand.u32 %s23, 1
        %s258 = scalar_lea.sflag [#allocation6], %s257
        %s259 = sand.u32 %s71, 1
        %s260 = scalar_lea.vmem [#allocation5], %s259
        %p261 = pneg %p84
        %p262 = pneg %p81
        %s263 = sand.u32 %s23, 1
        %s264 = scalar_lea.sflag [#allocation6], %s263
        %s265 = sand.u32 %s97, 1
        %s266 = scalar_lea.vmem [#allocation7], %s265
        %p267 = pneg %p110
        %p268 = pneg %p107
        %p269 = pneg %p138
        %p270 = pneg %p135
        %s271 = sand.u32 %s125, 1
        %s272 = scalar_lea.sflag [#allocation4], %s271
        %s273 = sand.u32 %s125, 1
        %s274 = smul.addr %s273, 64
        %s275 = scalar_lea.vmem [#allocation8], %s274
        %s276 = smul.u32 8, %s28
        %s277 = smul.u32 8, %s28
        %v278 = vld [vmem:[%s226] sm:$0xff]
        %v279 = vld [vmem:[%s226 + $0x8] sm:$0xff]
        %v280 = vld [vmem:[%s226 + $0x10] sm:$0xff]
        %v281 = vld [vmem:[%s226 + $0x18] sm:$0xff]
        %v282 = vld [vmem:[%s226 + $0x20] sm:$0xff]
        %v283 = vld [vmem:[%s226 + $0x28] sm:$0xff]
        %v284 = vld [vmem:[%s226 + $0x30] sm:$0xff]
        %v285 = vld [vmem:[%s226 + $0x38] sm:$0xff]
        %v286 = vld [vmem:[%s235] sm:$0x1]
        %v287 = vld [vmem:[%s244] sm:$0x1]
        %288 = vmatpush.msra.mxu0 1.0
        %289 = vmatpush.msra.mxu0 1.0
        %290 = vmatpush.msra.mxu0 1.0
        %291 = vmatpush.msra.mxu0 1.0
        %292 = vmatpush.msra.mxu0 1.0
        %293 = vmatpush.msra.mxu0 1.0
        %294 = vmatpush.msra.mxu0 1.0
        %295 = vmatpush.msra.mxu0 1.0
        %296 = vmatpush.msra.mxu0 1.0
        %297 = vmatpush.msra.mxu0 1.0
        %298 = vmatpush.msra.mxu0 1.0
        %299 = vmatpush.msra.mxu0 1.0
        %300 = vmatpush.msra.mxu0 1.0
        %301 = vmatpush.msra.mxu0 1.0
        %302 = vmatpush.msra.mxu0 1.0
        %303 = vmatpush.msra.mxu0 1.0
        %304 = vmatmul.f32.gmra.mxu0 %v278
        %v305 = vpop.f32.mrf.mxu0
        %v306 = vadd.f32 0.0, %v305
        %307 = vmatmul.f32.gmra.mxu0 %v279
        %v308 = vpop.f32.mrf.mxu0
        %v309 = vadd.f32 0.0, %v308
        %310 = vmatmul.f32.gmra.mxu0 %v280
        %v311 = vpop.f32.mrf.mxu0
        %v312 = vadd.f32 0.0, %v311
        %313 = vmatmul.f32.gmra.mxu0 %v281
        %v314 = vpop.f32.mrf.mxu0
        %v315 = vadd.f32 0.0, %v314
        %316 = vmatmul.f32.gmra.mxu0 %v282
        %v317 = vpop.f32.mrf.mxu0
        %v318 = vadd.f32 0.0, %v317
        %319 = vmatmul.f32.gmra.mxu0 %v283
        %v320 = vpop.f32.mrf.mxu0
        %v321 = vadd.f32 0.0, %v320
        %322 = vmatmul.f32.gmra.mxu0 %v284
        %v323 = vpop.f32.mrf.mxu0
        %v324 = vadd.f32 0.0, %v323
        %325 = vmatmul.f32.gmra.mxu0 %v285
        %v326 = vpop.f32.mrf.mxu0
        %v327 = vadd.f32 0.0, %v326
        %328 = vdwg.mxu0
        %v329 = vmul.f32 %v306, 0.0078125
        %v330 = vmul.f32 %v309, 0.0078125
        %v331 = vmul.f32 %v312, 0.0078125
        %v332 = vmul.f32 %v315, 0.0078125
        %v333 = vmul.f32 %v318, 0.0078125
        %v334 = vmul.f32 %v321, 0.0078125
        %v335 = vmul.f32 %v324, 0.0078125
        %v336 = vmul.f32 %v327, 0.0078125
        %338 = vset.pattern.permute.xlu0 0
        %339 = vperm.xlu0 %338, %v329
        %v340 = vpop.permute.xlu0 %339
        %343 = vset.pattern.permute.xlu0 0
        %344 = vperm.xlu0 %343, %v330
        %v345 = vpop.permute.xlu0 %344
        %348 = vset.pattern.permute.xlu0 0
        %349 = vperm.xlu0 %348, %v331
        %v350 = vpop.permute.xlu0 %349
        %353 = vset.pattern.permute.xlu0 0
        %354 = vperm.xlu0 %353, %v332
        %v355 = vpop.permute.xlu0 %354
        %358 = vset.pattern.permute.xlu0 0
        %359 = vperm.xlu0 %358, %v333
        %v360 = vpop.permute.xlu0 %359
        %363 = vset.pattern.permute.xlu0 0
        %364 = vperm.xlu0 %363, %v334
        %v365 = vpop.permute.xlu0 %364
        %368 = vset.pattern.permute.xlu0 0
        %369 = vperm.xlu0 %368, %v335
        %v370 = vpop.permute.xlu0 %369
        %373 = vset.pattern.permute.xlu0 0
        %374 = vperm.xlu0 %373, %v336
        %v375 = vpop.permute.xlu0 %374
        %v377 = vsub.f32 %v278, %v340
        %v378 = vsub.f32 %v279, %v345
        %v379 = vsub.f32 %v280, %v350
        %v380 = vsub.f32 %v281, %v355
        %v381 = vsub.f32 %v282, %v360
        %v382 = vsub.f32 %v283, %v365
        %v383 = vsub.f32 %v284, %v370
        %v384 = vsub.f32 %v285, %v375
        %v385 = vmul.f32 %v377, %v377
        %v386 = vmul.f32 %v378, %v378
        %v387 = vmul.f32 %v379, %v379
        %v388 = vmul.f32 %v380, %v380
        %v389 = vmul.f32 %v381, %v381
        %v390 = vmul.f32 %v382, %v382
        %v391 = vmul.f32 %v383, %v383
        %v392 = vmul.f32 %v384, %v384
        %393 = vmatpush.msra.mxu0 1.0
        %394 = vmatpush.msra.mxu0 1.0
        %395 = vmatpush.msra.mxu0 1.0
        %396 = vmatpush.msra.mxu0 1.0
        %397 = vmatpush.msra.mxu0 1.0
        %398 = vmatpush.msra.mxu0 1.0
        %399 = vmatpush.msra.mxu0 1.0
        %400 = vmatpush.msra.mxu0 1.0
        %401 = vmatpush.msra.mxu0 1.0
        %402 = vmatpush.msra.mxu0 1.0
        %403 = vmatpush.msra.mxu0 1.0
        %404 = vmatpush.msra.mxu0 1.0
        %405 = vmatpush.msra.mxu0 1.0
        %406 = vmatpush.msra.mxu0 1.0
        %407 = vmatpush.msra.mxu0 1.0
        %408 = vmatpush.msra.mxu0 1.0
        %409 = vmatmul.f32.gmra.mxu0 %v385
        %v410 = vpop.f32.mrf.mxu0
        %v411 = vadd.f32 0.0, %v410
        %412 = vmatmul.f32.gmra.mxu0 %v386
        %v413 = vpop.f32.mrf.mxu0
        %v414 = vadd.f32 0.0, %v413
        %415 = vmatmul.f32.gmra.mxu0 %v387
        %v416 = vpop.f32.mrf.mxu0
        %v417 = vadd.f32 0.0, %v416
        %418 = vmatmul.f32.gmra.mxu0 %v388
        %v419 = vpop.f32.mrf.mxu0
        %v420 = vadd.f32 0.0, %v419
        %421 = vmatmul.f32.gmra.mxu0 %v389
        %v422 = vpop.f32.mrf.mxu0
        %v423 = vadd.f32 0.0, %v422
        %424 = vmatmul.f32.gmra.mxu0 %v390
        %v425 = vpop.f32.mrf.mxu0
        %v426 = vadd.f32 0.0, %v425
        %427 = vmatmul.f32.gmra.mxu0 %v391
        %v428 = vpop.f32.mrf.mxu0
        %v429 = vadd.f32 0.0, %v428
        %430 = vmatmul.f32.gmra.mxu0 %v392
        %v431 = vpop.f32.mrf.mxu0
        %v432 = vadd.f32 0.0, %v431
        %433 = vdwg.mxu0
        %v434 = vmul.f32 %v411, 0.0078125
        %v435 = vmul.f32 %v414, 0.0078125
        %v436 = vmul.f32 %v417, 0.0078125
        %v437 = vmul.f32 %v420, 0.0078125
        %v438 = vmul.f32 %v423, 0.0078125
        %v439 = vmul.f32 %v426, 0.0078125
        %v440 = vmul.f32 %v429, 0.0078125
        %v441 = vmul.f32 %v432, 0.0078125
        %v442 = vadd.f32 %v434, 1e-05
        %v443 = vadd.f32 %v435, 1e-05
        %v444 = vadd.f32 %v436, 1e-05
        %v445 = vadd.f32 %v437, 1e-05
        %v446 = vadd.f32 %v438, 1e-05
        %v447 = vadd.f32 %v439, 1e-05
        %v448 = vadd.f32 %v440, 1e-05
        %v449 = vadd.f32 %v441, 1e-05
        %v450 = vrsqrt.pop %v442
        %v451 = vmul.f32 %v450, %v442
        %v452 = vmul.f32 %v451, %v450
        %v453 = vmul.f32 0.5, %v452
        %v454 = vsub.f32 1.5, %v453
        %v455 = vmul.f32 %v450, %v454
        %vm456 = vweird.f32 %v442
        %vm457 = vweird.f32 %v450
        %vm458 = vmor %vm456, %vm457
        %v459 = vsel %vm458, %v450, %v455
        %v460 = vrsqrt.pop %v443
        %v461 = vmul.f32 %v460, %v443
        %v462 = vmul.f32 %v461, %v460
        %v463 = vmul.f32 0.5, %v462
        %v464 = vsub.f32 1.5, %v463
        %v465 = vmul.f32 %v460, %v464
        %vm466 = vweird.f32 %v443
        %vm467 = vweird.f32 %v460
        %vm468 = vmor %vm466, %vm467
        %v469 = vsel %vm468, %v460, %v465
        %v470 = vrsqrt.pop %v444
        %v471 = vmul.f32 %v470, %v444
        %v472 = vmul.f32 %v471, %v470
        %v473 = vmul.f32 0.5, %v472
        %v474 = vsub.f32 1.5, %v473
        %v475 = vmul.f32 %v470, %v474
        %vm476 = vweird.f32 %v444
        %vm477 = vweird.f32 %v470
        %vm478 = vmor %vm476, %vm477
        %v479 = vsel %vm478, %v470, %v475
        %v480 = vrsqrt.pop %v445
        %v481 = vmul.f32 %v480, %v445
        %v482 = vmul.f32 %v481, %v480
        %v483 = vmul.f32 0.5, %v482
        %v484 = vsub.f32 1.5, %v483
        %v485 = vmul.f32 %v480, %v484
        %vm486 = vweird.f32 %v445
        %vm487 = vweird.f32 %v480
        %vm488 = vmor %vm486, %vm487
        %v489 = vsel %vm488, %v480, %v485
        %v490 = vrsqrt.pop %v446
        %v491 = vmul.f32 %v490, %v446
        %v492 = vmul.f32 %v491, %v490
        %v493 = vmul.f32 0.5, %v492
        %v494 = vsub.f32 1.5, %v493
        %v495 = vmul.f32 %v490, %v494
        %vm496 = vweird.f32 %v446
        %vm497 = vweird.f32 %v490
        %vm498 = vmor %vm496, %vm497
        %v499 = vsel %vm498, %v490, %v495
        %v500 = vrsqrt.pop %v447
        %v501 = vmul.f32 %v500, %v447
        %v502 = vmul.f32 %v501, %v500
        %v503 = vmul.f32 0.5, %v502
        %v504 = vsub.f32 1.5, %v503
        %v505 = vmul.f32 %v500, %v504
        %vm506 = vweird.f32 %v447
        %vm507 = vweird.f32 %v500
        %vm508 = vmor %vm506, %vm507
        %v509 = vsel %vm508, %v500, %v505
        %v510 = vrsqrt.pop %v448
        %v511 = vmul.f32 %v510, %v448
        %v512 = vmul.f32 %v511, %v510
        %v513 = vmul.f32 0.5, %v512
        %v514 = vsub.f32 1.5, %v513
        %v515 = vmul.f32 %v510, %v514
        %vm516 = vweird.f32 %v448
        %vm517 = vweird.f32 %v510
        %vm518 = vmor %vm516, %vm517
        %v519 = vsel %vm518, %v510, %v515
        %v520 = vrsqrt.pop %v449
        %v521 = vmul.f32 %v520, %v449
        %v522 = vmul.f32 %v521, %v520
        %v523 = vmul.f32 0.5, %v522
        %v524 = vsub.f32 1.5, %v523
        %v525 = vmul.f32 %v520, %v524
        %vm526 = vweird.f32 %v449
        %vm527 = vweird.f32 %v520
        %vm528 = vmor %vm526, %vm527
        %v529 = vsel %vm528, %v520, %v525
        %531 = vset.pattern.permute.xlu0 0
        %532 = vperm.xlu0 %531, %v459
        %v533 = vpop.permute.xlu0 %532
        %536 = vset.pattern.permute.xlu0 0
        %537 = vperm.xlu0 %536, %v469
        %v538 = vpop.permute.xlu0 %537
        %541 = vset.pattern.permute.xlu0 0
        %542 = vperm.xlu0 %541, %v479
        %v543 = vpop.permute.xlu0 %542
        %546 = vset.pattern.permute.xlu0 0
        %547 = vperm.xlu0 %546, %v489
        %v548 = vpop.permute.xlu0 %547
        %551 = vset.pattern.permute.xlu0 0
        %552 = vperm.xlu0 %551, %v499
        %v553 = vpop.permute.xlu0 %552
        %556 = vset.pattern.permute.xlu0 0
        %557 = vperm.xlu0 %556, %v509
        %v558 = vpop.permute.xlu0 %557
        %561 = vset.pattern.permute.xlu0 0
        %562 = vperm.xlu0 %561, %v519
        %v563 = vpop.permute.xlu0 %562
        %566 = vset.pattern.permute.xlu0 0
        %567 = vperm.xlu0 %566, %v529
        %v568 = vpop.permute.xlu0 %567
        %v570 = vmul.f32 %v377, %v533
        %v571 = vmul.f32 %v378, %v538
        %v572 = vmul.f32 %v379, %v543
        %v573 = vmul.f32 %v380, %v548
        %v574 = vmul.f32 %v381, %v553
        %v575 = vmul.f32 %v382, %v558
        %v576 = vmul.f32 %v383, %v563
        %v577 = vmul.f32 %v384, %v568
        %v578 = vadd.f32 %v286, 1.0
        %v580 = vperm.slane %v578, 0
        %v582 = vmul.f32 %v570, %v580
        %v583 = vmul.f32 %v571, %v580
        %v584 = vmul.f32 %v572, %v580
        %v585 = vmul.f32 %v573, %v580
        %v586 = vmul.f32 %v574, %v580
        %v587 = vmul.f32 %v575, %v580
        %v588 = vmul.f32 %v576, %v580
        %v589 = vmul.f32 %v577, %v580
        %v591 = vperm.slane %v287, 0
        %v593 = vadd.f32 %v582, %v591
        %v594 = vadd.f32 %v583, %v591
        %v595 = vadd.f32 %v584, %v591
        %v596 = vadd.f32 %v585, %v591
        %v597 = vadd.f32 %v586, %v591
        %v598 = vadd.f32 %v587, %v591
        %v599 = vadd.f32 %v588, %v591
        %v600 = vadd.f32 %v589, %v591
        %601 = vst [vmem:[%s275] sm:$0xff] %v593
        %602 = vst [vmem:[%s275 + $0x8] sm:$0xff] %v594
        %603 = vst [vmem:[%s275 + $0x10] sm:$0xff] %v595
        %604 = vst [vmem:[%s275 + $0x18] sm:$0xff] %v596
        %605 = vst [vmem:[%s275 + $0x20] sm:$0xff] %v597
        %606 = vst [vmem:[%s275 + $0x28] sm:$0xff] %v598
        %607 = vst [vmem:[%s275 + $0x30] sm:$0xff] %v599
        %608 = vst [vmem:[%s275 + $0x38] sm:$0xff] %v600
        %s609 = sand.u32 %s125, 1
        %s610 = scalar_lea.sflag [#allocation4], %s609
        %s611 = sand.u32 %s125, 1
        %s612 = smul.addr %s611, 64
        %s613 = scalar_lea.vmem [#allocation8], %s612
        // Predicated region
        $region45: #{tpu_custom_call.1} parent=31 // pred_check
          %p614 = pneg %p135
        $region46: #{tpu_custom_call.1} parent=31 // pred_check_branch
          %616 = sbr.rel (%p614) target = $region48
        $region47: #{tpu_custom_call.1} parent=31 // pred_region
          %s617 = smul.u32 8, %s28
          %619 = vsyncadd %s610, 0
          %s620 = smul.addr %s27, 8
          %s621 = sadd.s32 %s617, %s620
          %s622 = smul.addr %s621, 8
          %s623 = scalar_lea.hbm %s3, %s622
          %s624 = sshll.u32 %s613, 4
          %s625 = int_to_ptr.vmem [resolvable:$true] %s624
          %s626 = sshll.u32 %s623, 4
          %s627 = int_to_ptr.hbm [resolvable:$true] %s626
          %632 = dma.vmem_to_hbm [thread:$0]  %s625, 1024, %s627, %s610, 128, 128, 8
        $region48: #{tpu_custom_call.1} parent=31 // pred_fallthru
          _
      $region32: #{tpu_custom_call.1} parent=5 // pred_fallthru
        _
      %p633 = scmp.le.s32.totalorder 2, %s18
      // Predicated region
      $region49: #{tpu_custom_call.1} parent=5 // pred_check
        %p634 = pneg %p633
      $region50: #{tpu_custom_call.1} parent=5 // pred_check_branch
        %636 = sbr.rel (%p634) target = $region52
      $region51: #{tpu_custom_call.1} parent=5 // pred_region
        %s637 = ssub.s32 %s18, 2
        // Predicated region
        $region53: #{tpu_custom_call.1} parent=51 // pred_check
          %p638 = pneg %p141
        $region54: #{tpu_custom_call.1} parent=51 // pred_check_branch
          %640 = sbr.rel (%p638) target = $region56
        $region55: #{tpu_custom_call.1} parent=51 // pred_region
          %s641 = sand.u32 %s126, 1
          %s642 = scalar_lea.sflag [#allocation4], %s641
          %s643 = sand.u32 %s126, 1
          %s644 = smul.addr %s643, 64
          %s645 = scalar_lea.vmem [#allocation8], %s644
          %647 = dma.done %s642, 1024
        $region56: #{tpu_custom_call.1} parent=51 // pred_fallthru
          _
      $region52: #{tpu_custom_call.1} parent=5 // pred_fallthru
        _
    $region6: #{tpu_custom_call.1} parent=1 // loop_footer
      %s22 = sadd.s32 1, %s18
    $region7: #{tpu_custom_call.1} parent=1 // loop_footer_branch
      %17 = sbr.rel target = $region3
    $region8: #{tpu_custom_call.1} parent=1 // loop_exit
      _
    %648 = vsyncpa [#allocation3], 1
    %s649 = scalar_lea.sflag [#allocation3], 1
    %650 = vsyncpa %s649, 1
    %651 = vsyncpa [#allocation6], 1
    %s652 = scalar_lea.sflag [#allocation6], 1
    %653 = vsyncpa %s652, 1
    %654 = vsyncpa [#allocation4], 1
    %s655 = scalar_lea.sflag [#allocation4], 1
    %656 = vsyncpa %s655, 1

</llo_original>
